<compile_context>
chip_gen: v7x
topology: tpu7x:2x2x1
jax: 0.10.0
libtpu: 0.0.40
codegen_flags: <defaults>
</compile_context>

<pallas_src>
import functools

import jax
import jax.numpy as jnp
from jax.experimental import pallas as pl
from jax.experimental.pallas import tpu as pltpu

HP = 128            # padded feature width (one full lane dim)
MAX_TILE = 1024     # cap on batch-tile rows


# ----------------------------- device heuristics -----------------------------

def _device_kind():
    try:
        return jax.devices()[0].device_kind.lower()
    except Exception:
        return ""


def _use_bf16_tanh():
    """bf16 VPU/EUP exists on v6e/v7x; v5e has none (f32 tanh there)."""
    k = _device_kind()
    return ("v6" in k) or ("v7" in k)


def _num_tensorcores():
    """TensorCores per device: 2 on v7x (and megacore v4/v5p), else 1."""
    k = _device_kind()
    if "v7" in k:
        return 2
    if ("v4" in k or "v5p" in k) and "lite" not in k:
        return 2
    return 1


def _round_up(n, m):
    return ((n + m - 1) // m) * m


def _tile_plan(batch, num_cores, max_tile=MAX_TILE):
    """Return (padded_batch, tile_rows).

    - 1 TensorCore & batch fits one tile -> single grid step (weights are
      VMEM-resident, so extra steps only add ~0.35us/step fixed cost).
    - Otherwise at least `num_cores` tiles (feed both TCs on v7x), each a
      sublane multiple, capped at `max_tile` rows (VMEM is never a constraint
      here: total residency is well under 1 MiB + activations).
    """
    bp8 = _round_up(max(batch, 8), 8)
    if num_cores <= 1 and bp8 <= max_tile:
        return bp8, bp8
    n_tiles = max(num_cores, pl.cdiv(bp8, max_tile))
    tb = min(max_tile, _round_up(pl.cdiv(bp8, n_tiles), 8))
    bp = _round_up(bp8, tb)
    return bp, tb


# --------------------------------- kernel ------------------------------------

def mlp_kernel(x_ref, w_ref, c_ref, o_ref, *, n_mm, act_dtype):
    """One (TB, 1) batch tile -> (TB, HP) lane-dense output tile.

    x_ref : (TB, 1)        f32   input column
    w_ref : (n_mm, HP, HP) bf16  packed W^T for layers 2..L (VMEM-resident)
    c_ref : (8, HP)        f32   row 0 = W1 row, rows 1..L = biases b1..bL
    o_ref : (TB, HP)       f32   layer-L output in the leading out_dim lanes
    """
    x = x_ref[...]                      # (TB, 1) f32
    w1_row = c_ref[0:1, :]              # (1, HP) f32
    b1 = c_ref[1:2, :]

    # Layer 1: in_dim == 1 -> rank-1 product on the VPU (no MXU pass, f32 input).
    h = jnp.tanh((x * w1_row + b1).astype(act_dtype))          # (TB, HP)

    # Layers 2..L: bf16 MXU matmuls, f32 accumulation, f32 bias add.
    for li in range(n_mm):
        h = jnp.dot(h.astype(jnp.bfloat16), w_ref[li],
                    preferred_element_type=jnp.float32) + c_ref[li + 2:li + 3, :]
        if li < n_mm - 1:
            h = jnp.tanh(h.astype(act_dtype))

    o_ref[...] = h                      # lane-dense unmasked store (128 lanes)


# ------------------------------ param packing --------------------------------

def prepare_params(params, hp=HP):
    """One-time prep (outside the hot path).

    params: list of (W, b) with W shape (out_d, in_d); first layer must have
    in_d == 1. Returns:
      w_slab: (n_layers-1, hp, hp) bf16, w_slab[i] = zero-padded W_{i+2}^T
      c_slab: (8, hp) f32, row 0 = W1[:, 0], rows 1..n_layers = b1..bL
    All padded entries are exactly zero (required for the padding invariant).
    """
    n_layers = len(params)
    assert n_layers >= 2 and n_layers + 1 <= 8, "supports 2..7 Linear layers"
    W1, b1 = params[0]
    assert W1.shape[1] == 1, "kernel specializes layer 1 to in_dim == 1"
    assert W1.shape[0] <= hp

    n_mm = n_layers - 1
    w_slab = jnp.zeros((n_mm, hp, hp), jnp.float32)
    c_slab = jnp.zeros((8, hp), jnp.float32)
    c_slab = c_slab.at[0, :W1.shape[0]].set(W1[:, 0])
    c_slab = c_slab.at[1, :b1.shape[0]].set(b1)
    for li, (W, b) in enumerate(params[1:]):
        out_d, in_d = W.shape
        assert in_d <= hp and out_d <= hp
        w_slab = w_slab.at[li, :in_d, :out_d].set(W.T)
        c_slab = c_slab.at[li + 2, :b.shape[0]].set(b)
    return w_slab.astype(jnp.bfloat16), c_slab


# --------------------------------- wrapper -----------------------------------

def mlp_forward(x, w_slab, c_slab, *, out_dim, hp=HP):
    """x: (B, 1) float32. w_slab/c_slab: outputs of prepare_params."""
    B, D = x.shape
    assert D == 1, "kernel specializes the first layer to in_dim == 1"
    n_mm = w_slab.shape[0]

    num_cores = _num_tensorcores()
    act_dtype = jnp.bfloat16 if _use_bf16_tanh() else jnp.float32
    bp, tb = _tile_plan(B, num_cores)

    x_pad = x if bp == B else jnp.zeros((bp, 1), x.dtype).at[:B].set(x)

    out_pad = pl.pallas_call(
        functools.partial(mlp_kernel, n_mm=n_mm, act_dtype=act_dtype),
        out_shape=jax.ShapeDtypeStruct((bp, hp), jnp.float32),
        grid_spec=pltpu.PrefetchScalarGridSpec(
            num_scalar_prefetch=0,
            grid=(bp // tb,),
            in_specs=[
                pl.BlockSpec((tb, 1), lambda i: (i, 0)),         # x: streams per tile
                pl.BlockSpec((n_mm, hp, hp), lambda i: (0, 0, 0)),  # packed W^T slab (resident)
                pl.BlockSpec((8, hp), lambda i: (0, 0)),         # w1 row + biases (resident)
            ],
            out_specs=pl.BlockSpec((tb, hp), lambda i: (i, 0)),
        ),
        compiler_params=pltpu.CompilerParams(
            dimension_semantics=("parallel",)),
    )(x_pad, w_slab, c_slab)

    return out_pad[:B, :out_dim]


# ------------------------------ init & references ----------------------------

def init_params(key, hlayers):
    """Xavier (Glorot) normal weights, PyTorch-Linear-style uniform biases."""
    params = []
    for i in range(len(hlayers) - 1):
        fan_in, fan_out = hlayers[i], hlayers[i + 1]
        key, wk, bk = jax.random.split(key, 3)
        std = (2.0 / (fan_in + fan_out)) ** 0.5
        W = std * jax.random.normal(wk, (fan_out, fan_in), dtype=jnp.float32)
        bound = 1.0 / (fan_in ** 0.5)
        b = jax.random.uniform(bk, (fan_out,), jnp.float32, -bound, bound)
        params.append((W, b))
    return params


def reference_forward_f32(x, params):
    h = x
    for (W, b) in params[:-1]:
        h = jnp.tanh(h @ W.T + b)
    W, b = params[-1]
    return h @ W.T + b


def reference_forward_matched(x, params, act_dtype):
    """Same dtype policy as the kernel: f32 rank-1 layer 1, bf16 matmul
    operands with f32 accumulation, f32 bias add, tanh in act_dtype."""
    (W1, b1) = params[0]
    h = jnp.tanh((x * W1.T + b1).astype(act_dtype))
    for li, (W, b) in enumerate(params[1:]):
        y = jnp.dot(h.astype(jnp.bfloat16), W.T.astype(jnp.bfloat16),
                    preferred_element_type=jnp.float32) + b
        h = jnp.tanh(y.astype(act_dtype)) if li < len(params) - 2 else y
    return h


# ----------------------------------- main -------------------------------------

if __name__ == "__main__":
    # NeuralNetwork(hlayers=[1, 32, 32, 1]):
    #   Linear(1,32)+Tanh, Linear(32,32)+Tanh, Linear(32,1)
    hlayers = [1, 32, 32, 1]
    B = 100  # dom_samples in the original script

    key = jax.random.PRNGKey(0)
    params = init_params(key, hlayers)

    # x = linspace(-1, 1, dom_samples) as a column vector, like the PyTorch script.
    x = jnp.linspace(-1.0, 1.0, B, dtype=jnp.float32).reshape(B, 1)

    # One-time packing (outside the per-call hot path).
    w_slab, c_slab = prepare_params(params)

    fwd = jax.jit(functools.partial(mlp_forward, out_dim=hlayers[-1]))
    y = fwd(x, w_slab, c_slab)
    jax.block_until_ready(y)
    assert y.shape == (B, hlayers[-1])

    # Strict check vs a reference using the kernel's exact dtype policy.
    act_dtype = jnp.bfloat16 if _use_bf16_tanh() else jnp.float32
    y_ref_matched = reference_forward_matched(x, params, act_dtype)
    assert jnp.allclose(y, y_ref_matched, atol=5e-3, rtol=5e-3), "mismatch vs dtype-matched ref"

    # Loose sanity check vs the full-f32 reference (bf16 rounding only).
    y_ref_f32 = reference_forward_f32(x, params)
    assert jnp.allclose(y, y_ref_f32, atol=1e-1, rtol=1e-1), "mismatch vs f32 ref"

    print("KERNEL_OK")
</pallas_src>

<mosaic_0001>
module attributes {stable_mosaic.version = 11 : i64} {
  func.func @mlp_kernel(%arg0: i32, %arg1: memref<104x1xf32, #tpu.memory_space<vmem>>, %arg2: memref<2x128x128xbf16, #tpu.memory_space<vmem>>, %arg3: memref<8x128xf32, #tpu.memory_space<vmem>>, %arg4: memref<104x128xf32, #tpu.memory_space<vmem>>) attributes {dimension_semantics = [#tpu.dimension_semantics<parallel>], iteration_bounds = array<i64: 1>, scalar_prefetch = 0 : i64, scratch_operands = 0 : i64, tpu.core_type = #tpu.core_type<tc>, window_params = [{transform_indices = @transform_0, window_bounds = array<i64: 104, 1>}, {pipeline_mode = #tpu.pipeline_mode<synchronous>, transform_indices = @transform_1, window_bounds = array<i64: 2, 128, 128>}, {pipeline_mode = #tpu.pipeline_mode<synchronous>, transform_indices = @transform_2, window_bounds = array<i64: 8, 128>}, {transform_indices = @transform_3, window_bounds = array<i64: 104, 128>}]} {
    %c0 = arith.constant 0 : index
    %c0_0 = arith.constant 0 : index
    %0 = vector.load %arg1[%c0, %c0_0] : memref<104x1xf32, #tpu.memory_space<vmem>>, vector<104x1xf32>
    %c0_1 = arith.constant 0 : index
    %c0_2 = arith.constant 0 : index
    %1 = vector.load %arg3[%c0_1, %c0_2] : memref<8x128xf32, #tpu.memory_space<vmem>>, vector<1x128xf32>
    %c1 = arith.constant 1 : index
    %c0_3 = arith.constant 0 : index
    %2 = vector.load %arg3[%c1, %c0_3] : memref<8x128xf32, #tpu.memory_space<vmem>>, vector<1x128xf32>
    %3 = vector.broadcast %0 : vector<104x1xf32> to vector<104x128xf32>
    %4 = vector.broadcast %1 : vector<1x128xf32> to vector<104x128xf32>
    %5 = arith.mulf %3, %4 : vector<104x128xf32>
    %6 = vector.broadcast %2 : vector<1x128xf32> to vector<104x128xf32>
    %7 = arith.addf %5, %6 : vector<104x128xf32>
    %8 = math.tanh %7 : vector<104x128xf32>
    %9 = arith.truncf %8 : vector<104x128xf32> to vector<104x128xbf16>
    %c0_4 = arith.constant 0 : index
    %c0_5 = arith.constant 0 : index
    %c0_6 = arith.constant 0 : index
    %10 = vector.load %arg2[%c0_4, %c0_5, %c0_6] : memref<2x128x128xbf16, #tpu.memory_space<vmem>>, vector<1x128x128xbf16>
    %11 = vector.shape_cast %10 : vector<1x128x128xbf16> to vector<128x128xbf16>
    %cst = arith.constant dense<0.000000e+00> : vector<104x128xf32>
    %12 = tpu.matmul %9, %11, %cst {dimension_numbers = #tpu.dot_dimension_numbers<[1], [0], [0], [1], [0, 0, 1, 1], [], []>} : vector<104x128xbf16>, vector<128x128xbf16>, vector<104x128xf32> -> vector<104x128xf32>
    %c2 = arith.constant 2 : index
    %c0_7 = arith.constant 0 : index
    %13 = vector.load %arg3[%c2, %c0_7] : memref<8x128xf32, #tpu.memory_space<vmem>>, vector<1x128xf32>
    %14 = vector.broadcast %13 : vector<1x128xf32> to vector<104x128xf32>
    %15 = arith.addf %12, %14 : vector<104x128xf32>
    %16 = math.tanh %15 : vector<104x128xf32>
    %17 = arith.truncf %16 : vector<104x128xf32> to vector<104x128xbf16>
    %c1_8 = arith.constant 1 : index
    %c0_9 = arith.constant 0 : index
    %c0_10 = arith.constant 0 : index
    %18 = vector.load %arg2[%c1_8, %c0_9, %c0_10] : memref<2x128x128xbf16, #tpu.memory_space<vmem>>, vector<1x128x128xbf16>
    %19 = vector.shape_cast %18 : vector<1x128x128xbf16> to vector<128x128xbf16>
    %cst_11 = arith.constant dense<0.000000e+00> : vector<104x128xf32>
    %20 = tpu.matmul %17, %19, %cst_11 {dimension_numbers = #tpu.dot_dimension_numbers<[1], [0], [0], [1], [0, 0, 1, 1], [], []>} : vector<104x128xbf16>, vector<128x128xbf16>, vector<104x128xf32> -> vector<104x128xf32>
    %c3 = arith.constant 3 : index
    %c0_12 = arith.constant 0 : index
    %21 = vector.load %arg3[%c3, %c0_12] : memref<8x128xf32, #tpu.memory_space<vmem>>, vector<1x128xf32>
    %22 = vector.broadcast %21 : vector<1x128xf32> to vector<104x128xf32>
    %23 = arith.addf %20, %22 : vector<104x128xf32>
    %c0_13 = arith.constant 0 : index
    %c0_14 = arith.constant 0 : index
    %24 = vector.load %arg4[%c0_13, %c0_14] : memref<104x128xf32, #tpu.memory_space<vmem>>, vector<104x128xf32>
    tpu.vector_store %arg4[%c0_13, %c0_14], %23 {strides = array<i32>} : memref<104x128xf32, #tpu.memory_space<vmem>>, vector<104x128xf32>,
    return
  }
  func.func @transform_0(%arg0: i32) -> (i32, i32) {
    %c0_i32 = arith.constant 0 : i32
    %c0_i32_0 = arith.constant 0 : i32
    return %arg0, %c0_i32 : i32, i32
  }
  func.func @transform_1(%arg0: i32) -> (i32, i32, i32) {
    %c0_i32 = arith.constant 0 : i32
    %c0_i32_0 = arith.constant 0 : i32
    %c0_i32_1 = arith.constant 0 : i32
    %c0_i32_2 = arith.constant 0 : i32
    return %c0_i32, %c0_i32_0, %c0_i32_1 : i32, i32, i32
  }
  func.func @transform_2(%arg0: i32) -> (i32, i32) {
    %c0_i32 = arith.constant 0 : i32
    %c0_i32_0 = arith.constant 0 : i32
    %c0_i32_1 = arith.constant 0 : i32
    return %c0_i32, %c0_i32_0 : i32, i32
  }
  func.func @transform_3(%arg0: i32) -> (i32, i32) {
    %c0_i32 = arith.constant 0 : i32
    %c0_i32_0 = arith.constant 0 : i32
    return %arg0, %c0_i32 : i32, i32
  }
}

</mosaic_0001>

<llo_original>
// kernel: mlp_forward.1
$region0: #{mlp_forward.1}
  #allocation0 [shape = 'u32[]', space=smem, size = 0x4, offset = 0x4, fixed_abs, tag = 'smem constant byte address 0x4 - core index']
  #allocation1 [shape = 'u32[144,128]{1,0:T(1,128)}', space=vmem, size = 0x12000, scoped, tag = 'internal scratch']
  %s0 = inlined_call_operand.vmem [shape: f32[104,1], index: 0, kind: input, shape index: {}]
  %s1 = inlined_call_operand.vmem [shape: bf16[2,128,128], index: 1, kind: input, shape index: {}]
  %s2 = inlined_call_operand.vmem [shape: f32[8,128], index: 2, kind: input, shape index: {}]
  %s3 = inlined_call_operand.vmem [shape: f32[104,128], index: 3, kind: output, shape index: {}]
  %s4 = sld [smem:[#allocation0]]
  $region22: #{mlp_forward.1} parent=0
    _
  %s6 = ssub.s32 1, %s4
  %s7 = scalar_select 0, %s6, %s4
  // Predicated region
  $region2: #{mlp_forward.1} parent=0 // pred_check
    _
  $region3: #{mlp_forward.1} parent=0 // pred_check_branch
    %9 = sbr.rel (0) target = $region5
  $region4: #{mlp_forward.1} parent=0 // pred_region
    _
  $region5: #{mlp_forward.1} parent=0 // pred_fallthru
    _
  // Predicated region
  $region6: #{mlp_forward.1} parent=0 // pred_check
    _
  $region7: #{mlp_forward.1} parent=0 // pred_check_branch
    %11 = sbr.rel (0) target = $region9
  $region8: #{mlp_forward.1} parent=0 // pred_region
    _
  $region9: #{mlp_forward.1} parent=0 // pred_fallthru
    _
  // Predicated region
  $region10: #{mlp_forward.1} parent=0 // pred_check
    _
  $region11: #{mlp_forward.1} parent=0 // pred_check_branch
    %13 = sbr.rel (0) target = $region13
  $region12: #{mlp_forward.1} parent=0 // pred_region
    _
  $region13: #{mlp_forward.1} parent=0 // pred_fallthru
    _
  %v15 = vld [vmem:[%s0] sm:$0xff]
  %v16 = vld [vmem:[%s0 + $0x8] sm:$0xff]
  %v17 = vld [vmem:[%s0 + $0x10] sm:$0xff]
  %v18 = vld [vmem:[%s0 + $0x18] sm:$0xff]
  %v19 = vld [vmem:[%s0 + $0x20] sm:$0xff]
  %v20 = vld [vmem:[%s0 + $0x28] sm:$0xff]
  %v21 = vld [vmem:[%s0 + $0x30] sm:$0xff]
  %v22 = vld [vmem:[%s0 + $0x38] sm:$0xff]
  %v23 = vld [vmem:[%s0 + $0x40] sm:$0xff]
  %v24 = vld [vmem:[%s0 + $0x48] sm:$0xff]
  %v25 = vld [vmem:[%s0 + $0x50] sm:$0xff]
  %v26 = vld [vmem:[%s0 + $0x58] sm:$0xff]
  %v27 = vld [vmem:[%s0 + $0x60] sm:$0xff]
  %v28 = vld [vmem:[%s2] sm:$0x1]
  %v29 = vld [vmem:[%s2 + $0x1] sm:$0x1]
  %31 = vset.pattern.permute.xlu0 0
  %32 = vperm.xlu0 %31, %v15
  %v33 = vpop.permute.xlu0 %32
  %36 = vset.pattern.permute.xlu0 0
  %37 = vperm.xlu0 %36, %v16
  %v38 = vpop.permute.xlu0 %37
  %41 = vset.pattern.permute.xlu0 0
  %42 = vperm.xlu0 %41, %v17
  %v43 = vpop.permute.xlu0 %42
  %46 = vset.pattern.permute.xlu0 0
  %47 = vperm.xlu0 %46, %v18
  %v48 = vpop.permute.xlu0 %47
  %51 = vset.pattern.permute.xlu0 0
  %52 = vperm.xlu0 %51, %v19
  %v53 = vpop.permute.xlu0 %52
  %56 = vset.pattern.permute.xlu0 0
  %57 = vperm.xlu0 %56, %v20
  %v58 = vpop.permute.xlu0 %57
  %61 = vset.pattern.permute.xlu0 0
  %62 = vperm.xlu0 %61, %v21
  %v63 = vpop.permute.xlu0 %62
  %66 = vset.pattern.permute.xlu0 0
  %67 = vperm.xlu0 %66, %v22
  %v68 = vpop.permute.xlu0 %67
  %71 = vset.pattern.permute.xlu0 0
  %72 = vperm.xlu0 %71, %v23
  %v73 = vpop.permute.xlu0 %72
  %76 = vset.pattern.permute.xlu0 0
  %77 = vperm.xlu0 %76, %v24
  %v78 = vpop.permute.xlu0 %77
  %81 = vset.pattern.permute.xlu0 0
  %82 = vperm.xlu0 %81, %v25
  %v83 = vpop.permute.xlu0 %82
  %86 = vset.pattern.permute.xlu0 0
  %87 = vperm.xlu0 %86, %v26
  %v88 = vpop.permute.xlu0 %87
  %91 = vset.pattern.permute.xlu0 0
  %92 = vperm.xlu0 %91, %v27
  %v93 = vpop.permute.xlu0 %92
  %v95 = vlaneseq
  %v96 = vshrl.u32 %v95, 7
  %v97 = vsub.s32 0, %v96
  %v98 = vrot.slane %v28, %v97
  %v99 = vmul.f32 %v33, %v98
  %v100 = vmul.f32 %v38, %v98
  %v101 = vmul.f32 %v43, %v98
  %v102 = vmul.f32 %v48, %v98
  %v103 = vmul.f32 %v53, %v98
  %v104 = vmul.f32 %v58, %v98
  %v105 = vmul.f32 %v63, %v98
  %v106 = vmul.f32 %v68, %v98
  %v107 = vmul.f32 %v73, %v98
  %v108 = vmul.f32 %v78, %v98
  %v109 = vmul.f32 %v83, %v98
  %v110 = vmul.f32 %v88, %v98
  %v111 = vmul.f32 %v93, %v98
  %v112 = vlaneseq
  %v113 = vshrl.u32 %v112, 7
  %v114 = vsub.s32 0, %v113
  %v115 = vrot.slane %v29, %v114
  %v116 = vadd.f32 %v99, %v115
  %v117 = vadd.f32 %v100, %v115
  %v118 = vadd.f32 %v101, %v115
  %v119 = vadd.f32 %v102, %v115
  %v120 = vadd.f32 %v103, %v115
  %v121 = vadd.f32 %v104, %v115
  %v122 = vadd.f32 %v105, %v115
  %v123 = vadd.f32 %v106, %v115
  %v124 = vadd.f32 %v107, %v115
  %v125 = vadd.f32 %v108, %v115
  %v126 = vadd.f32 %v109, %v115
  %v127 = vadd.f32 %v110, %v115
  %v128 = vadd.f32 %v111, %v115
  %v129 = vtanh.pop %v116
  %v130 = vtanh.pop %v117
  %v131 = vtanh.pop %v118
  %v132 = vtanh.pop %v119
  %v133 = vtanh.pop %v120
  %v134 = vtanh.pop %v121
  %v135 = vtanh.pop %v122
  %v136 = vtanh.pop %v123
  %v137 = vtanh.pop %v124
  %v138 = vtanh.pop %v125
  %v139 = vtanh.pop %v126
  %v140 = vtanh.pop %v127
  %v141 = vtanh.pop %v128
  %v142 = vpack.c.bf16 %v130, %v129
  %v143 = vpack.c.bf16 %v132, %v131
  %v144 = vpack.c.bf16 %v134, %v133
  %v145 = vpack.c.bf16 %v136, %v135
  %v146 = vpack.c.bf16 %v138, %v137
  %v147 = vpack.c.bf16 %v140, %v139
  %v148 = vpack.c.bf16 %v141, %v141
  %v149 = vld [vmem:[%s1] sm:$0xf]
  %v150 = vld [vmem:[%s1 + $0x4] sm:$0xf]
  %v151 = vld [vmem:[%s1 + $0x8] sm:$0xf]
  %v152 = vld [vmem:[%s1 + $0xc] sm:$0xf]
  %v153 = vld [vmem:[%s1 + $0x10] sm:$0xf]
  %v154 = vld [vmem:[%s1 + $0x14] sm:$0xf]
  %v155 = vld [vmem:[%s1 + $0x18] sm:$0xf]
  %v156 = vld [vmem:[%s1 + $0x1c] sm:$0xf]
  %v157 = vld [vmem:[%s1 + $0x20] sm:$0xf]
  %v158 = vld [vmem:[%s1 + $0x24] sm:$0xf]
  %v159 = vld [vmem:[%s1 + $0x28] sm:$0xf]
  %v160 = vld [vmem:[%s1 + $0x2c] sm:$0xf]
  %v161 = vld [vmem:[%s1 + $0x30] sm:$0xf]
  %v162 = vld [vmem:[%s1 + $0x34] sm:$0xf]
  %v163 = vld [vmem:[%s1 + $0x38] sm:$0xf]
  %v164 = vld [vmem:[%s1 + $0x3c] sm:$0xf]
  %v165 = vld [vmem:[%s2 + $0x2] sm:$0x1]
  %v166 = vlaneseq
  %v167 = vshrl.u32 %v166, 7
  %v168 = vsub.s32 0, %v167
  %v169 = vrot.slane %v165, %v168
  %v186 = vunpack.c.l.b16 %v149
  %v187 = vunpack.c.l.b16 %v150
  %v188 = vunpack.c.l.b16 %v151
  %v189 = vunpack.c.l.b16 %v152
  %v190 = vunpack.c.l.b16 %v153
  %v191 = vunpack.c.l.b16 %v154
  %v192 = vunpack.c.l.b16 %v155
  %v193 = vunpack.c.l.b16 %v156
  %v194 = vunpack.c.l.b16 %v157
  %v195 = vunpack.c.l.b16 %v158
  %v196 = vunpack.c.l.b16 %v159
  %v197 = vunpack.c.l.b16 %v160
  %v198 = vunpack.c.l.b16 %v161
  %v199 = vunpack.c.l.b16 %v162
  %v200 = vunpack.c.l.b16 %v163
  %v201 = vunpack.c.l.b16 %v164
  %v202 = vpack.c.b16 %v187, %v186
  %v203 = vpack.c.b16 %v189, %v188
  %v204 = vpack.c.b16 %v191, %v190
  %v205 = vpack.c.b16 %v193, %v192
  %v206 = vpack.c.b16 %v195, %v194
  %v207 = vpack.c.b16 %v197, %v196
  %v208 = vpack.c.b16 %v199, %v198
  %v209 = vpack.c.b16 %v201, %v200
  %218 = vmatprep.subr.bf16.mxu0 0
  %219 = vmatpush1.bf16.msra.mxu0 %v202
  %220 = vmatprep.subr.bf16.mxu0 0
  %221 = vmatpush1.bf16.msra.mxu0 %v203
  %222 = vmatprep.subr.bf16.mxu0 0
  %223 = vmatpush1.bf16.msra.mxu0 %v204
  %224 = vmatprep.subr.bf16.mxu0 0
  %225 = vmatpush1.bf16.msra.mxu0 %v205
  %226 = vmatprep.subr.bf16.mxu0 0
  %227 = vmatpush1.bf16.msra.mxu0 %v206
  %228 = vmatprep.subr.bf16.mxu0 0
  %229 = vmatpush1.bf16.msra.mxu0 %v207
  %230 = vmatprep.subr.bf16.mxu0 0
  %231 = vmatpush1.bf16.msra.mxu0 %v208
  %232 = vmatprep.subr.bf16.mxu0 0
  %233 = vmatpush1.bf16.msra.mxu0 %v209
  %234 = vmatprep.subr.bf16.mxu0 0
  %235 = vmatpush1.bf16.msra.mxu0 0
  %236 = vmatprep.subr.bf16.mxu0 0
  %237 = vmatpush1.bf16.msra.mxu0 0
  %238 = vmatprep.subr.bf16.mxu0 0
  %239 = vmatpush1.bf16.msra.mxu0 0
  %240 = vmatprep.subr.bf16.mxu0 0
  %241 = vmatpush1.bf16.msra.mxu0 0
  %242 = vmatprep.subr.bf16.mxu0 0
  %243 = vmatpush1.bf16.msra.mxu0 0
  %244 = vmatprep.subr.bf16.mxu0 0
  %245 = vmatpush1.bf16.msra.mxu0 0
  %246 = vmatprep.subr.bf16.mxu0 0
  %247 = vmatpush1.bf16.msra.mxu0 0
  %248 = vmatprep.subr.bf16.mxu0 0
  %249 = vmatpush1.bf16.msra.mxu0 0
  %250 = vmatprep.mubr.bf16.mxu0 0
  %251 = vmatmul.mubr.bf16.gmra.mrb[0].mxu0 %v142
  %v252 = vpop.f32.mrb[0].mxu0
  %v253 = vadd.f32 %v169, %v252
  %v254 = vpop.f32.mrb[0].mxu0
  %v255 = vpop.f32.mrb[0].mxu0
  %v256 = vadd.f32 %v169, %v255
  %v257 = vpop.f32.mrb[0].mxu0
  %258 = vmatprep.mubr.bf16.mxu0 0
  %259 = vmatmul.mubr.bf16.gmra.mrb[0].mxu0 %v143
  %v260 = vpop.f32.mrb[0].mxu0
  %v261 = vadd.f32 %v169, %v260
  %v262 = vpop.f32.mrb[0].mxu0
  %v263 = vpop.f32.mrb[0].mxu0
  %v264 = vadd.f32 %v169, %v263
  %v265 = vpop.f32.mrb[0].mxu0
  %266 = vmatprep.mubr.bf16.mxu0 0
  %267 = vmatmul.mubr.bf16.gmra.mrb[0].mxu0 %v144
  %v268 = vpop.f32.mrb[0].mxu0
  %v269 = vadd.f32 %v169, %v268
  %v270 = vpop.f32.mrb[0].mxu0
  %v271 = vpop.f32.mrb[0].mxu0
  %v272 = vadd.f32 %v169, %v271
  %v273 = vpop.f32.mrb[0].mxu0
  %274 = vmatprep.mubr.bf16.mxu0 0
  %275 = vmatmul.mubr.bf16.gmra.mrb[0].mxu0 %v145
  %v276 = vpop.f32.mrb[0].mxu0
  %v277 = vadd.f32 %v169, %v276
  %v278 = vpop.f32.mrb[0].mxu0
  %v279 = vpop.f32.mrb[0].mxu0
  %v280 = vadd.f32 %v169, %v279
  %v281 = vpop.f32.mrb[0].mxu0
  %282 = vmatprep.mubr.bf16.mxu0 0
  %283 = vmatmul.mubr.bf16.gmra.mrb[0].mxu0 %v146
  %v284 = vpop.f32.mrb[0].mxu0
  %v285 = vadd.f32 %v169, %v284
  %v286 = vpop.f32.mrb[0].mxu0
  %v287 = vpop.f32.mrb[0].mxu0
  %v288 = vadd.f32 %v169, %v287
  %v289 = vpop.f32.mrb[0].mxu0
  %290 = vmatprep.mubr.bf16.mxu0 0
  %291 = vmatmul.mubr.bf16.gmra.mrb[0].mxu0 %v147
  %v292 = vpop.f32.mrb[0].mxu0
  %v293 = vadd.f32 %v169, %v292
  %v294 = vpop.f32.mrb[0].mxu0
  %v295 = vpop.f32.mrb[0].mxu0
  %v296 = vadd.f32 %v169, %v295
  %v297 = vpop.f32.mrb[0].mxu0
  %298 = vmatprep.mubr.bf16.mxu0 0
  %299 = vmatmul.mubr.bf16.gmra.mrb[0].mxu0 %v148
  %v300 = vpop.f32.mrb[0].mxu0
  %v301 = vadd.f32 %v169, %v300
  %v302 = vpop.f32.mrb[0].mxu0
  %v303 = vpop.f32.mrb[0].mxu0
  %v304 = vpop.f32.mrb[0].mxu0
  %305 = vdwg.mxu0
  %v306 = vtanh.pop %v253
  %v307 = vtanh.pop %v256
  %v308 = vtanh.pop %v261
  %v309 = vtanh.pop %v264
  %v310 = vtanh.pop %v269
  %v311 = vtanh.pop %v272
  %v312 = vtanh.pop %v277
  %v313 = vtanh.pop %v280
  %v314 = vtanh.pop %v285
  %v315 = vtanh.pop %v288
  %v316 = vtanh.pop %v293
  %v317 = vtanh.pop %v296
  %v318 = vtanh.pop %v301
  %v319 = vpack.c.bf16 %v307, %v306
  %v320 = vpack.c.bf16 %v309, %v308
  %v321 = vpack.c.bf16 %v311, %v310
  %v322 = vpack.c.bf16 %v313, %v312
  %v323 = vpack.c.bf16 %v315, %v314
  %v324 = vpack.c.bf16 %v317, %v316
  %v325 = vpack.c.bf16 %v318, %v318
  %s326 = scalar_lea.vmem %s1, 64
  %v327 = vld [vmem:[%s326] sm:$0xf]
  %v328 = vld [vmem:[%s326 + $0x4] sm:$0xf]
  %v329 = vld [vmem:[%s326 + $0x8] sm:$0xf]
  %v330 = vld [vmem:[%s326 + $0xc] sm:$0xf]
  %v331 = vld [vmem:[%s326 + $0x10] sm:$0xf]
  %v332 = vld [vmem:[%s326 + $0x14] sm:$0xf]
  %v333 = vld [vmem:[%s326 + $0x18] sm:$0xf]
  %v334 = vld [vmem:[%s326 + $0x1c] sm:$0xf]
  %v335 = vld [vmem:[%s326 + $0x20] sm:$0xf]
  %v336 = vld [vmem:[%s326 + $0x24] sm:$0xf]
  %v337 = vld [vmem:[%s326 + $0x28] sm:$0xf]
  %v338 = vld [vmem:[%s326 + $0x2c] sm:$0xf]
  %v339 = vld [vmem:[%s326 + $0x30] sm:$0xf]
  %v340 = vld [vmem:[%s326 + $0x34] sm:$0xf]
  %v341 = vld [vmem:[%s326 + $0x38] sm:$0xf]
  %v342 = vld [vmem:[%s326 + $0x3c] sm:$0xf]
  %v343 = vld [vmem:[%s2 + $0x3] sm:$0x1]
  %v344 = vlaneseq
  %v345 = vshrl.u32 %v344, 7
  %v346 = vsub.s32 0, %v345
  %v347 = vrot.slane %v343, %v346
  %v364 = vunpack.c.l.b16 %v327
  %v365 = vunpack.c.l.b16 %v328
  %v366 = vunpack.c.l.b16 %v329
  %v367 = vunpack.c.l.b16 %v330
  %v368 = vunpack.c.l.b16 %v331
  %v369 = vunpack.c.l.b16 %v332
  %v370 = vunpack.c.l.b16 %v333
  %v371 = vunpack.c.l.b16 %v334
  %v372 = vunpack.c.l.b16 %v335
  %v373 = vunpack.c.l.b16 %v336
  %v374 = vunpack.c.l.b16 %v337
  %v375 = vunpack.c.l.b16 %v338
  %v376 = vunpack.c.l.b16 %v339
  %v377 = vunpack.c.l.b16 %v340
  %v378 = vunpack.c.l.b16 %v341
  %v379 = vunpack.c.l.b16 %v342
  %v380 = vpack.c.b16 %v365, %v364
  %v381 = vpack.c.b16 %v367, %v366
  %v382 = vpack.c.b16 %v369, %v368
  %v383 = vpack.c.b16 %v371, %v370
  %v384 = vpack.c.b16 %v373, %v372
  %v385 = vpack.c.b16 %v375, %v374
  %v386 = vpack.c.b16 %v377, %v376
  %v387 = vpack.c.b16 %v379, %v378
  %396 = vmatprep.subr.bf16.mxu0 0
  %397 = vmatpush1.bf16.msra.mxu0 %v380
  %398 = vmatprep.subr.bf16.mxu0 0
  %399 = vmatpush1.bf16.msra.mxu0 %v381
  %400 = vmatprep.subr.bf16.mxu0 0
  %401 = vmatpush1.bf16.msra.mxu0 %v382
  %402 = vmatprep.subr.bf16.mxu0 0
  %403 = vmatpush1.bf16.msra.mxu0 %v383
  %404 = vmatprep.subr.bf16.mxu0 0
  %405 = vmatpush1.bf16.msra.mxu0 %v384
  %406 = vmatprep.subr.bf16.mxu0 0
  %407 = vmatpush1.bf16.msra.mxu0 %v385
  %408 = vmatprep.subr.bf16.mxu0 0
  %409 = vmatpush1.bf16.msra.mxu0 %v386
  %410 = vmatprep.subr.bf16.mxu0 0
  %411 = vmatpush1.bf16.msra.mxu0 %v387
  %412 = vmatprep.subr.bf16.mxu0 0
  %413 = vmatpush1.bf16.msra.mxu0 0
  %414 = vmatprep.subr.bf16.mxu0 0
  %415 = vmatpush1.bf16.msra.mxu0 0
  %416 = vmatprep.subr.bf16.mxu0 0
  %417 = vmatpush1.bf16.msra.mxu0 0
  %418 = vmatprep.subr.bf16.mxu0 0
  %419 = vmatpush1.bf16.msra.mxu0 0
  %420 = vmatprep.subr.bf16.mxu0 0
  %421 = vmatpush1.bf16.msra.mxu0 0
  %422 = vmatprep.subr.bf16.mxu0 0
  %423 = vmatpush1.bf16.msra.mxu0 0
  %424 = vmatprep.subr.bf16.mxu0 0
  %425 = vmatpush1.bf16.msra.mxu0 0
  %426 = vmatprep.subr.bf16.mxu0 0
  %427 = vmatpush1.bf16.msra.mxu0 0
  %428 = vmatprep.mubr.bf16.mxu0 0
  %429 = vmatmul.mubr.bf16.gmra.mrb[0].mxu0 %v319
  %v430 = vpop.f32.mrb[0].mxu0
  %v431 = vadd.f32 %v347, %v430
  %v432 = vpop.f32.mrb[0].mxu0
  %v433 = vpop.f32.mrb[0].mxu0
  %v434 = vadd.f32 %v347, %v433
  %v435 = vpop.f32.mrb[0].mxu0
  %436 = vmatprep.mubr.bf16.mxu0 0
  %437 = vmatmul.mubr.bf16.gmra.mrb[0].mxu0 %v320
  %v438 = vpop.f32.mrb[0].mxu0
  %v439 = vadd.f32 %v347, %v438
  %v440 = vpop.f32.mrb[0].mxu0
  %v441 = vpop.f32.mrb[0].mxu0
  %v442 = vadd.f32 %v347, %v441
  %v443 = vpop.f32.mrb[0].mxu0
  %444 = vmatprep.mubr.bf16.mxu0 0
  %445 = vmatmul.mubr.bf16.gmra.mrb[0].mxu0 %v321
  %v446 = vpop.f32.mrb[0].mxu0
  %v447 = vadd.f32 %v347, %v446
  %v448 = vpop.f32.mrb[0].mxu0
  %v449 = vpop.f32.mrb[0].mxu0
  %v450 = vadd.f32 %v347, %v449
  %v451 = vpop.f32.mrb[0].mxu0
  %452 = vmatprep.mubr.bf16.mxu0 0
  %453 = vmatmul.mubr.bf16.gmra.mrb[0].mxu0 %v322
  %v454 = vpop.f32.mrb[0].mxu0
  %v455 = vadd.f32 %v347, %v454
  %v456 = vpop.f32.mrb[0].mxu0
  %v457 = vpop.f32.mrb[0].mxu0
  %v458 = vadd.f32 %v347, %v457
  %v459 = vpop.f32.mrb[0].mxu0
  %460 = vmatprep.mubr.bf16.mxu0 0
  %461 = vmatmul.mubr.bf16.gmra.mrb[0].mxu0 %v323
  %v462 = vpop.f32.mrb[0].mxu0
  %v463 = vadd.f32 %v347, %v462
  %v464 = vpop.f32.mrb[0].mxu0
  %v465 = vpop.f32.mrb[0].mxu0
  %v466 = vadd.f32 %v347, %v465
  %v467 = vpop.f32.mrb[0].mxu0
  %468 = vmatprep.mubr.bf16.mxu0 0
  %469 = vmatmul.mubr.bf16.gmra.mrb[0].mxu0 %v324
  %v470 = vpop.f32.mrb[0].mxu0
  %v471 = vadd.f32 %v347, %v470
  %v472 = vpop.f32.mrb[0].mxu0
  %v473 = vpop.f32.mrb[0].mxu0
  %v474 = vadd.f32 %v347, %v473
  %v475 = vpop.f32.mrb[0].mxu0
  %476 = vmatprep.mubr.bf16.mxu0 0
  %477 = vmatmul.mubr.bf16.gmra.mrb[0].mxu0 %v325
  %v478 = vpop.f32.mrb[0].mxu0
  %v479 = vadd.f32 %v347, %v478
  %v480 = vpop.f32.mrb[0].mxu0
  %v481 = vpop.f32.mrb[0].mxu0
  %v482 = vpop.f32.mrb[0].mxu0
  %483 = vdwg.mxu0
  %484 = vst [vmem:[%s3] sm:$0xff] %v431
  %485 = vst [vmem:[%s3 + $0x8] sm:$0xff] %v434
  %486 = vst [vmem:[%s3 + $0x10] sm:$0xff] %v439
  %487 = vst [vmem:[%s3 + $0x18] sm:$0xff] %v442
  %488 = vst [vmem:[%s3 + $0x20] sm:$0xff] %v447
  %489 = vst [vmem:[%s3 + $0x28] sm:$0xff] %v450
  %490 = vst [vmem:[%s3 + $0x30] sm:$0xff] %v455
  %491 = vst [vmem:[%s3 + $0x38] sm:$0xff] %v458
  %492 = vst [vmem:[%s3 + $0x40] sm:$0xff] %v463
  %493 = vst [vmem:[%s3 + $0x48] sm:$0xff] %v466
  %494 = vst [vmem:[%s3 + $0x50] sm:$0xff] %v471
  %495 = vst [vmem:[%s3 + $0x58] sm:$0xff] %v474
  %496 = vst [vmem:[%s3 + $0x60] sm:$0xff] %v479
  // Predicated region
  $region14: #{mlp_forward.1} parent=0 // pred_check
    _
  $region15: #{mlp_forward.1} parent=0 // pred_check_branch
    %498 = sbr.rel (0) target = $region17
  $region16: #{mlp_forward.1} parent=0 // pred_region
    _
  $region17: #{mlp_forward.1} parent=0 // pred_fallthru
    _
  // Predicated region
  $region18: #{mlp_forward.1} parent=0 // pred_check
    _
  $region19: #{mlp_forward.1} parent=0 // pred_check_branch
    %500 = sbr.rel (0) target = $region21
  $region20: #{mlp_forward.1} parent=0 // pred_region
    _
  $region21: #{mlp_forward.1} parent=0 // pred_fallthru
    _

</llo_original>
